<compile_context>
chip_gen: v7x
topology: tpu7x:2x2x1
jax: 0.10.0
libtpu: 0.0.40
codegen_flags: <defaults>
</compile_context>

<pallas_src>
import functools

import jax
import jax.numpy as jnp
from jax import lax
from jax.experimental import pallas as pl
from jax.experimental.pallas import tpu as pltpu


def _round_up(x, m):
    return ((x + m - 1) // m) * m


def _pick_cout_tile(cout, target=1024):
    """Largest multiple-of-8 divisor of `cout` that is <= target
    (falls back to a single full-extent block)."""
    best = None
    for d in range(8, min(cout, target) + 1, 8):
        if cout % d == 0:
            best = d
    return best if best is not None else cout


# ---------- fused conv(1x1, s2) + BN(train) + add + ReLU kernel ----------
def _fused_kernel(a_ref, w_ref, res_ref, gamma_ref, beta_ref, o_ref, *, inv_m, eps):
    # a_ref:      (Cin_p, M)  bf16  -- activations, resident across the Cout grid
    # w_ref:      (tn, Cin_p) bf16  -- weight tile (native [Cout, Cin] layout)
    # res_ref:    (tn, M)     f32   -- residual tile (flattened NCHW)
    # gamma/beta: (tn, 1)     f32
    # o_ref:      (tn, M)     f32   -- output tile (flattened NCHW)
    y = jnp.dot(w_ref[...], a_ref[...],
                preferred_element_type=jnp.float32)        # (tn, M) on the MXU

    # BatchNorm2d training-mode batch statistics per channel (= per row),
    # fused single pass: biased var = E[y^2] - mean^2.
    s1 = jnp.sum(y, axis=1, keepdims=True)                 # (tn, 1)
    s2 = jnp.sum(y * y, axis=1, keepdims=True)             # (tn, 1)
    mean = s1 * inv_m
    var = s2 * inv_m - mean * mean
    scale = gamma_ref[...] * lax.rsqrt(var + eps)          # EUP rsqrt
    shift = beta_ref[...] - mean * scale

    out = y * scale + shift + res_ref[...]
    o_ref[...] = jnp.maximum(out, 0.0).astype(o_ref.dtype)


def fused_conv_bn_add_relu(a_bf16, w_bf16, res, gamma2d, beta2d, *, cout_tile, eps):
    Cin_p, M = a_bf16.shape
    Cout, Cin_p_w = w_bf16.shape
    assert Cin_p == Cin_p_w
    assert Cout % cout_tile == 0
    assert cout_tile % 8 == 0 or cout_tile == Cout

    kernel = functools.partial(_fused_kernel, inv_m=1.0 / float(M), eps=float(eps))
    return pl.pallas_call(
        kernel,
        out_shape=jax.ShapeDtypeStruct((Cout, M), jnp.float32),
        grid_spec=pltpu.PrefetchScalarGridSpec(
            num_scalar_prefetch=0,
            grid=(Cout // cout_tile,),
            in_specs=[
                pl.BlockSpec((Cin_p, M), lambda j: (0, 0)),          # activations (resident)
                pl.BlockSpec((cout_tile, Cin_p), lambda j: (j, 0)),  # weight tile
                pl.BlockSpec((cout_tile, M), lambda j: (j, 0)),      # residual tile
                pl.BlockSpec((cout_tile, 1), lambda j: (j, 0)),      # gamma
                pl.BlockSpec((cout_tile, 1), lambda j: (j, 0)),      # beta
            ],
            out_specs=pl.BlockSpec((cout_tile, M), lambda j: (j, 0)),
        ),
        compiler_params=pltpu.CompilerParams(
            dimension_semantics=("parallel",)),
    )(a_bf16, w_bf16, res, gamma2d, beta2d)


# ---------- one-time parameter preprocessing (outside the hot path) ----------
def prepare_conv_weight(conv_w):
    """[Cout, Cin, 1, 1] f32 -> [Cout, Cin_p] bf16, Cin zero-padded to a
    multiple of 128.  Done once per parameter, not per forward call."""
    Cout, Cin = conv_w.shape[0], conv_w.shape[1]
    Cin_p = _round_up(Cin, 128)
    w2d = conv_w.reshape(Cout, Cin)
    return jnp.pad(w2d, ((0, 0), (0, Cin_p - Cin))).astype(jnp.bfloat16)


# ---------- module forward ----------
def module_forward(x151, x167, w_prep, bn_gamma, bn_beta, *, eps=1e-5, cout_tile=None):
    # x151: [N, Cin, H, W]   x167: [N, Cout, Ho, Wo]   w_prep: [Cout, Cin_p] bf16
    N, Cin, H, W = x151.shape
    Cout, Cin_p = w_prep.shape

    # 1x1 stride-2 conv == spatial subsample + per-pixel channel matmul.
    x_s = x151[:, :, ::2, ::2]                               # [N, Cin, Ho, Wo]
    Ho, Wo = x_s.shape[2], x_s.shape[3]
    M = N * Ho * Wo

    # Channels-major activations [Cin_p, M].  For the module's N=1 the
    # transpose only moves a degenerate axis (free); the subsample is a copy
    # anyway, so the zero-pad + bf16 cast fuse into it (~0.5 MB total).
    a = jnp.transpose(x_s, (1, 0, 2, 3)).reshape(Cin, M)
    a = jnp.pad(a, ((0, Cin_p - Cin), (0, 0))).astype(jnp.bfloat16)

    # Residual stays in (flattened) NCHW -- no NHWC round trip (free for N=1).
    res = jnp.transpose(x167, (1, 0, 2, 3)).reshape(Cout, M).astype(jnp.float32)

    gamma2d = bn_gamma.astype(jnp.float32).reshape(Cout, 1)
    beta2d = bn_beta.astype(jnp.float32).reshape(Cout, 1)

    if cout_tile is None:
        cout_tile = _pick_cout_tile(Cout)   # 968 for Cout=2904 -> grid of 3

    out = fused_conv_bn_add_relu(a, w_prep, res, gamma2d, beta2d,
                                 cout_tile=cout_tile, eps=eps)   # [Cout, M]

    # TODO(synk): training-mode BN also updates running_mean/running_var; the
    # batch stats are computed in-kernel but not emitted (forward output only).
    # Back to NCHW; for N=1 this transpose is again free.
    return jnp.transpose(out.reshape(Cout, N, Ho, Wo), (1, 0, 2, 3))


# ---------- pure-jnp reference ----------
def module_forward_ref(x151, x167, conv_w, bn_gamma, bn_beta, *, eps=1e-5,
                       matmul_dtype=jnp.float32):
    N, Cin, H, W = x151.shape
    Cout = conv_w.shape[0]
    x_s = x151[:, :, ::2, ::2]
    Ho, Wo = x_s.shape[2], x_s.shape[3]
    a = jnp.transpose(x_s, (0, 2, 3, 1)).reshape(-1, Cin)
    b = conv_w.reshape(Cout, Cin).T
    y = jnp.dot(a.astype(matmul_dtype), b.astype(matmul_dtype),
                preferred_element_type=jnp.float32)
    mean = jnp.mean(y, axis=0)
    var = jnp.var(y, axis=0)                                 # biased, BN-train style
    yn = (y - mean) / jnp.sqrt(var + eps) * bn_gamma + bn_beta
    res = jnp.transpose(x167, (0, 2, 3, 1)).reshape(-1, Cout)
    out = jnp.maximum(yn + res, 0.0)
    return jnp.transpose(out.reshape(N, Ho, Wo, Cout), (0, 3, 1, 2))


if __name__ == "__main__":
    key = jax.random.PRNGKey(0)
    k1, k2, k3, k4, k5 = jax.random.split(key, 5)

    # Small shapes consistent with the module (real: N=1, Cin=1056, Cout=2904,
    # H=W=28 -> Ho=Wo=14, M=196).  Chosen so Cin needs padding (96 -> 128),
    # M (= 2*7*7 = 98) is not a multiple of 8 or 128 (exercises masked lane
    # reductions/stores), N>1 exercises the batched layout path, and
    # cout_tile=40 gives a 3-step Cout grid (multi-tile index maps + residency).
    N, Cin, H, W = 2, 96, 14, 14
    Cout = 120
    Ho, Wo = (H + 1) // 2, (W + 1) // 2

    x151 = jax.random.normal(k1, (N, Cin, H, W), jnp.float32)
    x167 = jax.random.normal(k2, (N, Cout, Ho, Wo), jnp.float32)
    conv_w = jax.random.normal(k3, (Cout, Cin, 1, 1), jnp.float32) * 0.05
    bn_gamma = 1.0 + 0.1 * jax.random.normal(k4, (Cout,), jnp.float32)
    bn_beta = 0.1 * jax.random.normal(k5, (Cout,), jnp.float32)

    # One-time weight preprocessing (outside the per-call hot path).
    w_prep = prepare_conv_weight(conv_w)

    out = module_forward(x151, x167, w_prep, bn_gamma, bn_beta, cout_tile=40)
    out = jax.block_until_ready(out)
    assert out.shape == (N, Cout, Ho, Wo), out.shape

    # Tight check against a reference using the same bf16-matmul / f32-accum
    # precision as the kernel.
    ref_bf16 = module_forward_ref(x151, x167, conv_w, bn_gamma, bn_beta,
                                  matmul_dtype=jnp.bfloat16)
    assert jnp.allclose(out, ref_bf16, atol=2e-3, rtol=2e-3), \
        float(jnp.max(jnp.abs(out - ref_bf16)))

    # Loose sanity check against the full-f32 reference.
    ref_f32 = module_forward_ref(x151, x167, conv_w, bn_gamma, bn_beta)
    assert jnp.allclose(out, ref_f32, atol=1e-1, rtol=1e-1)

    print("KERNEL_OK")
</pallas_src>

<mosaic_0001>
module attributes {stable_mosaic.version = 11 : i64} {
  func.func @_fused_kernel(%arg0: i32, %arg1: memref<128x98xbf16, #tpu.memory_space<vmem>>, %arg2: memref<40x128xbf16, #tpu.memory_space<vmem>>, %arg3: memref<40x98xf32, #tpu.memory_space<vmem>>, %arg4: memref<40x1xf32, #tpu.memory_space<vmem>>, %arg5: memref<40x1xf32, #tpu.memory_space<vmem>>, %arg6: memref<40x98xf32, #tpu.memory_space<vmem>>) attributes {dimension_semantics = [#tpu.dimension_semantics<parallel>], iteration_bounds = array<i64: 3>, scalar_prefetch = 0 : i64, scratch_operands = 0 : i64, tpu.core_type = #tpu.core_type<tc>, window_params = [{pipeline_mode = #tpu.pipeline_mode<synchronous>, transform_indices = @transform_0, window_bounds = array<i64: 128, 98>}, {transform_indices = @transform_1, window_bounds = array<i64: 40, 128>}, {transform_indices = @transform_2, window_bounds = array<i64: 40, 98>}, {transform_indices = @transform_3, window_bounds = array<i64: 40, 1>}, {transform_indices = @transform_4, window_bounds = array<i64: 40, 1>}, {transform_indices = @transform_5, window_bounds = array<i64: 40, 98>}]} {
    %c0 = arith.constant 0 : index
    %c0_0 = arith.constant 0 : index
    %0 = vector.load %arg2[%c0, %c0_0] : memref<40x128xbf16, #tpu.memory_space<vmem>>, vector<40x128xbf16>
    %c0_1 = arith.constant 0 : index
    %c0_2 = arith.constant 0 : index
    %1 = vector.load %arg1[%c0_1, %c0_2] : memref<128x98xbf16, #tpu.memory_space<vmem>>, vector<128x98xbf16>
    %cst = arith.constant dense<0.000000e+00> : vector<40x98xf32>
    %2 = tpu.matmul %0, %1, %cst {dimension_numbers = #tpu.dot_dimension_numbers<[1], [0], [0], [1], [0, 0, 1, 1], [], []>} : vector<40x128xbf16>, vector<128x98xbf16>, vector<40x98xf32> -> vector<40x98xf32>
    %cst_3 = arith.constant dense<0.000000e+00> : vector<40xf32>
    %3 = vector.multi_reduction <add>, %2, %cst_3 [1] : vector<40x98xf32> to vector<40xf32>
    %4 = vector.shape_cast %3 : vector<40xf32> to vector<40x1xf32>
    %5 = arith.mulf %2, %2 : vector<40x98xf32>
    %cst_4 = arith.constant dense<0.000000e+00> : vector<40xf32>
    %6 = vector.multi_reduction <add>, %5, %cst_4 [1] : vector<40x98xf32> to vector<40xf32>
    %7 = vector.shape_cast %6 : vector<40xf32> to vector<40x1xf32>
    %cst_5 = arith.constant 0.0102040814 : f32
    %8 = vector.broadcast %cst_5 : f32 to vector<40x1xf32>
    %9 = arith.mulf %4, %8 : vector<40x1xf32>
    %cst_6 = arith.constant 0.0102040814 : f32
    %10 = vector.broadcast %cst_6 : f32 to vector<40x1xf32>
    %11 = arith.mulf %7, %10 : vector<40x1xf32>
    %12 = arith.mulf %9, %9 : vector<40x1xf32>
    %13 = arith.subf %11, %12 : vector<40x1xf32>
    %c0_7 = arith.constant 0 : index
    %c0_8 = arith.constant 0 : index
    %14 = vector.load %arg4[%c0_7, %c0_8] : memref<40x1xf32, #tpu.memory_space<vmem>>, vector<40x1xf32>
    %cst_9 = arith.constant 9.99999974E-6 : f32
    %15 = vector.broadcast %cst_9 : f32 to vector<40x1xf32>
    %16 = arith.addf %13, %15 : vector<40x1xf32>
    %17 = math.rsqrt %16 : vector<40x1xf32>
    %18 = arith.mulf %14, %17 : vector<40x1xf32>
    %c0_10 = arith.constant 0 : index
    %c0_11 = arith.constant 0 : index
    %19 = vector.load %arg5[%c0_10, %c0_11] : memref<40x1xf32, #tpu.memory_space<vmem>>, vector<40x1xf32>
    %20 = arith.mulf %9, %18 : vector<40x1xf32>
    %21 = arith.subf %19, %20 : vector<40x1xf32>
    %22 = vector.broadcast %18 : vector<40x1xf32> to vector<40x98xf32>
    %23 = arith.mulf %2, %22 : vector<40x98xf32>
    %24 = vector.broadcast %21 : vector<40x1xf32> to vector<40x98xf32>
    %25 = arith.addf %23, %24 : vector<40x98xf32>
    %c0_12 = arith.constant 0 : index
    %c0_13 = arith.constant 0 : index
    %26 = vector.load %arg3[%c0_12, %c0_13] : memref<40x98xf32, #tpu.memory_space<vmem>>, vector<40x98xf32>
    %27 = arith.addf %25, %26 : vector<40x98xf32>
    %cst_14 = arith.constant 0.000000e+00 : f32
    %28 = vector.broadcast %cst_14 : f32 to vector<40x98xf32>
    %29 = arith.maximumf %27, %28 : vector<40x98xf32>
    %c0_15 = arith.constant 0 : index
    %c0_16 = arith.constant 0 : index
    %30 = vector.load %arg6[%c0_15, %c0_16] : memref<40x98xf32, #tpu.memory_space<vmem>>, vector<40x98xf32>
    tpu.vector_store %arg6[%c0_15, %c0_16], %29 {strides = array<i32>} : memref<40x98xf32, #tpu.memory_space<vmem>>, vector<40x98xf32>,
    return
  }
  func.func @transform_0(%arg0: i32) -> (i32, i32) {
    %c0_i32 = arith.constant 0 : i32
    %c0_i32_0 = arith.constant 0 : i32
    %c0_i32_1 = arith.constant 0 : i32
    return %c0_i32, %c0_i32_0 : i32, i32
  }
  func.func @transform_1(%arg0: i32) -> (i32, i32) {
    %c0_i32 = arith.constant 0 : i32
    %c0_i32_0 = arith.constant 0 : i32
    return %arg0, %c0_i32 : i32, i32
  }
  func.func @transform_2(%arg0: i32) -> (i32, i32) {
    %c0_i32 = arith.constant 0 : i32
    %c0_i32_0 = arith.constant 0 : i32
    return %arg0, %c0_i32 : i32, i32
  }
  func.func @transform_3(%arg0: i32) -> (i32, i32) {
    %c0_i32 = arith.constant 0 : i32
    %c0_i32_0 = arith.constant 0 : i32
    return %arg0, %c0_i32 : i32, i32
  }
  func.func @transform_4(%arg0: i32) -> (i32, i32) {
    %c0_i32 = arith.constant 0 : i32
    %c0_i32_0 = arith.constant 0 : i32
    return %arg0, %c0_i32 : i32, i32
  }
  func.func @transform_5(%arg0: i32) -> (i32, i32) {
    %c0_i32 = arith.constant 0 : i32
    %c0_i32_0 = arith.constant 0 : i32
    return %arg0, %c0_i32 : i32, i32
  }
}

</mosaic_0001>

<llo_original>
// kernel: tpu_custom_call.1
$region0: #{tpu_custom_call.1}
  #allocation0 [shape = 'u32[]', space=smem, size = 0x4, offset = 0x4, fixed_abs, tag = 'smem constant byte address 0x4 - core index']
  #allocation1 [shape = 'u32[144,128]{1,0:T(1,128)}', space=vmem, size = 0x12000, scoped, tag = 'internal scratch']
  %s0 = inlined_call_operand.vmem [shape: bf16[128,98], index: 0, kind: input, shape index: {}]
  %s1 = inlined_call_operand.vmem [shape: bf16[120,128], index: 1, kind: input, shape index: {}]
  %s2 = inlined_call_operand.vmem [shape: f32[120,98], index: 2, kind: input, shape index: {}]
  %s3 = inlined_call_operand.vmem [shape: f32[120,1], index: 3, kind: input, shape index: {}]
  %s4 = inlined_call_operand.vmem [shape: f32[120,1], index: 4, kind: input, shape index: {}]
  %s5 = inlined_call_operand.vmem [shape: f32[120,98], index: 5, kind: output, shape index: {}]
  %s6 = sld [smem:[#allocation0]]
  $region53: #{tpu_custom_call.1} parent=0
    _
  %s8 = ssub.s32 1, %s6
  %s9 = scalar_select 0, %s8, %s6
  loop: start=0, step=1, limit=5
  $region2: #{tpu_custom_call.1} parent=0 // loop_pre_header
    _
  $region3: #{tpu_custom_call.1} parent=0 // loop_header
    %s11 = sphi 0, %s15
    %p12 = scmp.ge.s32.totalorder %s11, 5
    %s19 = sphi 0, %s19
    %s21 = sphi 0, %s19
    %s22 = sphi 0, %s21
    %s36 = sphi 0, %s22
    %s42 = sphi 0, %s44
    %s45 = sphi 0, %s42
    %s46 = sphi 0, %s45
    %s62 = sphi 0, %s46
    %s68 = sphi 0, %s70
    %s71 = sphi 0, %s68
    %s72 = sphi 0, %s71
    %s88 = sphi 0, %s72
    %s94 = sphi 0, %s96
    %s97 = sphi 0, %s94
    %s98 = sphi 0, %s97
    %s114 = sphi 0, %s98
    %s120 = sphi 0, %s122
    %s123 = sphi 0, %s120
    %s124 = sphi 0, %s123
    %s140 = sphi 0, %s124
    %s146 = sphi 0, %s148
    %s149 = sphi 0, %s146
    %s150 = sphi 0, %s149
    %s166 = sphi 0, %s150
  $region4: #{tpu_custom_call.1} parent=0 // loop_header_branch
    %14 = sbr.rel (%p12) target = $region8
  $region5: #{tpu_custom_call.1} parent=0 // loop_body
    %s16 = ssub.s32 %s11, 1
    %s17 = ssub.s32 %s11, 2
    %s18 = sadd.s32 %s11, 1
    %s20 = sadd.s32 %s19, 1
    %p23 = scmp.eq.s32.totalorder %s11, 2
    %p24 = scmp.ne.s32.totalorder %s19, %s21
    %p25 = scmp.eq.s32.totalorder %s11, 0
    %p26 = por %p24, %p25
    %p27 = scmp.ne.s32.totalorder %s19, %s21
    %p28 = scmp.eq.s32.totalorder %s16, 2
    %p29 = por %p27, %p28
    %p30 = scmp.ne.s32.totalorder %s21, %s22
    %p31 = scmp.eq.s32.totalorder %s16, 0
    %p32 = por %p30, %p31
    %p33 = scmp.ne.s32.totalorder %s21, %s22
    %p34 = scmp.eq.s32.totalorder %s17, 2
    %p35 = por %p33, %p34
    %p37 = scmp.ne.s32.totalorder %s22, %s36
    %p38 = scmp.eq.s32.totalorder %s17, 0
    %p39 = por %p37, %p38
    %s40 = ssub.s32 %s11, %s18
    %p41 = scmp.eq.s32.totalorder %s40, 0
    %s43 = sadd.s32 %s42, 1
    %s44 = scalar_select %p41, %s42, %s43
    %p47 = pneg %p41
    %p48 = scmp.eq.s32.totalorder %s11, 2
    %p49 = por %p47, %p48
    %p50 = scmp.ne.s32.totalorder %s42, %s45
    %p51 = scmp.eq.s32.totalorder %s11, 0
    %p52 = por %p50, %p51
    %p53 = scmp.ne.s32.totalorder %s42, %s45
    %p54 = scmp.eq.s32.totalorder %s16, 2
    %p55 = por %p53, %p54
    %p56 = scmp.ne.s32.totalorder %s45, %s46
    %p57 = scmp.eq.s32.totalorder %s16, 0
    %p58 = por %p56, %p57
    %p59 = scmp.ne.s32.totalorder %s45, %s46
    %p60 = scmp.eq.s32.totalorder %s17, 2
    %p61 = por %p59, %p60
    %p63 = scmp.ne.s32.totalorder %s46, %s62
    %p64 = scmp.eq.s32.totalorder %s17, 0
    %p65 = por %p63, %p64
    %s66 = ssub.s32 %s11, %s18
    %p67 = scmp.eq.s32.totalorder %s66, 0
    %s69 = sadd.s32 %s68, 1
    %s70 = scalar_select %p67, %s68, %s69
    %p73 = pneg %p67
    %p74 = scmp.eq.s32.totalorder %s11, 2
    %p75 = por %p73, %p74
    %p76 = scmp.ne.s32.totalorder %s68, %s71
    %p77 = scmp.eq.s32.totalorder %s11, 0
    %p78 = por %p76, %p77
    %p79 = scmp.ne.s32.totalorder %s68, %s71
    %p80 = scmp.eq.s32.totalorder %s16, 2
    %p81 = por %p79, %p80
    %p82 = scmp.ne.s32.totalorder %s71, %s72
    %p83 = scmp.eq.s32.totalorder %s16, 0
    %p84 = por %p82, %p83
    %p85 = scmp.ne.s32.totalorder %s71, %s72
    %p86 = scmp.eq.s32.totalorder %s17, 2
    %p87 = por %p85, %p86
    %p89 = scmp.ne.s32.totalorder %s72, %s88
    %p90 = scmp.eq.s32.totalorder %s17, 0
    %p91 = por %p89, %p90
    %s92 = ssub.s32 %s11, %s18
    %p93 = scmp.eq.s32.totalorder %s92, 0
    %s95 = sadd.s32 %s94, 1
    %s96 = scalar_select %p93, %s94, %s95
    %p99 = pneg %p93
    %p100 = scmp.eq.s32.totalorder %s11, 2
    %p101 = por %p99, %p100
    %p102 = scmp.ne.s32.totalorder %s94, %s97
    %p103 = scmp.eq.s32.totalorder %s11, 0
    %p104 = por %p102, %p103
    %p105 = scmp.ne.s32.totalorder %s94, %s97
    %p106 = scmp.eq.s32.totalorder %s16, 2
    %p107 = por %p105, %p106
    %p108 = scmp.ne.s32.totalorder %s97, %s98
    %p109 = scmp.eq.s32.totalorder %s16, 0
    %p110 = por %p108, %p109
    %p111 = scmp.ne.s32.totalorder %s97, %s98
    %p112 = scmp.eq.s32.totalorder %s17, 2
    %p113 = por %p111, %p112
    %p115 = scmp.ne.s32.totalorder %s98, %s114
    %p116 = scmp.eq.s32.totalorder %s17, 0
    %p117 = por %p115, %p116
    %s118 = ssub.s32 %s11, %s18
    %p119 = scmp.eq.s32.totalorder %s118, 0
    %s121 = sadd.s32 %s120, 1
    %s122 = scalar_select %p119, %s120, %s121
    %p125 = pneg %p119
    %p126 = scmp.eq.s32.totalorder %s11, 2
    %p127 = por %p125, %p126
    %p128 = scmp.ne.s32.totalorder %s120, %s123
    %p129 = scmp.eq.s32.totalorder %s11, 0
    %p130 = por %p128, %p129
    %p131 = scmp.ne.s32.totalorder %s120, %s123
    %p132 = scmp.eq.s32.totalorder %s16, 2
    %p133 = por %p131, %p132
    %p134 = scmp.ne.s32.totalorder %s123, %s124
    %p135 = scmp.eq.s32.totalorder %s16, 0
    %p136 = por %p134, %p135
    %p137 = scmp.ne.s32.totalorder %s123, %s124
    %p138 = scmp.eq.s32.totalorder %s17, 2
    %p139 = por %p137, %p138
    %p141 = scmp.ne.s32.totalorder %s124, %s140
    %p142 = scmp.eq.s32.totalorder %s17, 0
    %p143 = por %p141, %p142
    %s144 = ssub.s32 %s11, %s18
    %p145 = scmp.eq.s32.totalorder %s144, 0
    %s147 = sadd.s32 %s146, 1
    %s148 = scalar_select %p145, %s146, %s147
    %p151 = pneg %p145
    %p152 = scmp.eq.s32.totalorder %s11, 2
    %p153 = por %p151, %p152
    %p154 = scmp.ne.s32.totalorder %s146, %s149
    %p155 = scmp.eq.s32.totalorder %s11, 0
    %p156 = por %p154, %p155
    %p157 = scmp.ne.s32.totalorder %s146, %s149
    %p158 = scmp.eq.s32.totalorder %s16, 2
    %p159 = por %p157, %p158
    %p160 = scmp.ne.s32.totalorder %s149, %s150
    %p161 = scmp.eq.s32.totalorder %s16, 0
    %p162 = por %p160, %p161
    %p163 = scmp.ne.s32.totalorder %s149, %s150
    %p164 = scmp.eq.s32.totalorder %s17, 2
    %p165 = por %p163, %p164
    %p167 = scmp.ne.s32.totalorder %s150, %s166
    %p168 = scmp.eq.s32.totalorder %s17, 0
    %p169 = por %p167, %p168
    %p170 = scmp.le.s32.totalorder 1, %s11
    %p171 = scmp.lt.s32.totalorder %s11, 4
    %p172 = pnand %p170, %p171
    %p173 = pneg %p172
    // Predicated region
    $region9: #{tpu_custom_call.1} parent=5 // pred_check
      _
    $region10: #{tpu_custom_call.1} parent=5 // pred_check_branch
      %175 = sbr.rel (%p172) target = $region12
    $region11: #{tpu_custom_call.1} parent=5 // pred_region
      %s176 = ssub.s32 %s11, 1
      // Predicated region
      $region13: #{tpu_custom_call.1} parent=11 // pred_check
        %p177 = pneg %p32
      $region14: #{tpu_custom_call.1} parent=11 // pred_check_branch
        %179 = sbr.rel (%p177) target = $region16
      $region15: #{tpu_custom_call.1} parent=11 // pred_region
        _
      $region16: #{tpu_custom_call.1} parent=11 // pred_fallthru
        _
    $region12: #{tpu_custom_call.1} parent=5 // pred_fallthru
      _
    %p180 = scmp.lt.s32.totalorder %s11, 3
    // Predicated region
    $region17: #{tpu_custom_call.1} parent=5 // pred_check
      %p181 = pneg %p180
    $region18: #{tpu_custom_call.1} parent=5 // pred_check_branch
      %183 = sbr.rel (%p181) target = $region20
    $region19: #{tpu_custom_call.1} parent=5 // pred_region
      // Predicated region
      $region21: #{tpu_custom_call.1} parent=19 // pred_check
        %p184 = pneg %p52
      $region22: #{tpu_custom_call.1} parent=19 // pred_check_branch
        %186 = sbr.rel (%p184) target = $region24
      $region23: #{tpu_custom_call.1} parent=19 // pred_region
        %s187 = smul.u32 5, %s11
        %p188 = scmp.lt.s32.totalorder %s187, 14
        %s189 = scalar_select %p188, %s187, 14
        %s190 = smul.addr %s189, 4
        %s191 = scalar_lea.vmem %s1, %s190
        %s192 = smul.u32 5, %s11
      $region24: #{tpu_custom_call.1} parent=19 // pred_fallthru
        _
      // Predicated region
      $region25: #{tpu_custom_call.1} parent=19 // pred_check
        %p193 = pneg %p78
      $region26: #{tpu_custom_call.1} parent=19 // pred_check_branch
        %195 = sbr.rel (%p193) target = $region28
      $region27: #{tpu_custom_call.1} parent=19 // pred_region
        %s196 = smul.u32 5, %s11
        %p197 = scmp.lt.s32.totalorder %s196, 14
        %s198 = scalar_select %p197, %s196, 14
        %s199 = smul.addr %s198, 8
        %s200 = scalar_lea.vmem %s2, %s199
        %s201 = smul.u32 5, %s11
      $region28: #{tpu_custom_call.1} parent=19 // pred_fallthru
        _
      // Predicated region
      $region29: #{tpu_custom_call.1} parent=19 // pred_check
        %p202 = pneg %p104
      $region30: #{tpu_custom_call.1} parent=19 // pred_check_branch
        %204 = sbr.rel (%p202) target = $region32
      $region31: #{tpu_custom_call.1} parent=19 // pred_region
        %s205 = smul.u32 5, %s11
        %p206 = scmp.lt.s32.totalorder %s205, 14
        %s207 = scalar_select %p206, %s205, 14
        %s208 = smul.addr %s207, 8
        %s209 = scalar_lea.vmem %s3, %s208
        %s210 = smul.u32 5, %s11
      $region32: #{tpu_custom_call.1} parent=19 // pred_fallthru
        _
      // Predicated region
      $region33: #{tpu_custom_call.1} parent=19 // pred_check
        %p211 = pneg %p130
      $region34: #{tpu_custom_call.1} parent=19 // pred_check_branch
        %213 = sbr.rel (%p211) target = $region36
      $region35: #{tpu_custom_call.1} parent=19 // pred_region
        %s214 = smul.u32 5, %s11
        %p215 = scmp.lt.s32.totalorder %s214, 14
        %s216 = scalar_select %p215, %s214, 14
        %s217 = smul.addr %s216, 8
        %s218 = scalar_lea.vmem %s4, %s217
        %s219 = smul.u32 5, %s11
      $region36: #{tpu_custom_call.1} parent=19 // pred_fallthru
        _
    $region20: #{tpu_custom_call.1} parent=5 // pred_fallthru
      _
    %p220 = scmp.le.s32.totalorder 1, %s11
    %p221 = scmp.lt.s32.totalorder %s11, 4
    %p222 = pnand %p220, %p221
    %p223 = pneg %p222
    // Predicated region
    $region37: #{tpu_custom_call.1} parent=5 // pred_check
      _
    $region38: #{tpu_custom_call.1} parent=5 // pred_check_branch
      %225 = sbr.rel (%p222) target = $region40
    $region39: #{tpu_custom_call.1} parent=5 // pred_region
      %s226 = ssub.s32 %s11, 1
      %p227 = pneg %p32
      %p228 = pneg %p29
      %s229 = smul.u32 5, %s16
      %p230 = scmp.lt.s32.totalorder %s229, 14
      %s231 = scalar_select %p230, %s229, 14
      %s232 = smul.addr %s231, 4
      %s233 = scalar_lea.vmem %s1, %s232
      %p234 = pneg %p58
      %p235 = pneg %p55
      %s236 = smul.u32 5, %s16
      %p237 = scmp.lt.s32.totalorder %s236, 14
      %s238 = scalar_select %p237, %s236, 14
      %s239 = smul.addr %s238, 8
      %s240 = scalar_lea.vmem %s2, %s239
      %p241 = pneg %p84
      %p242 = pneg %p81
      %s243 = smul.u32 5, %s16
      %p244 = scmp.lt.s32.totalorder %s243, 14
      %s245 = scalar_select %p244, %s243, 14
      %s246 = smul.addr %s245, 8
      %s247 = scalar_lea.vmem %s3, %s246
      %p248 = pneg %p110
      %p249 = pneg %p107
      %s250 = smul.u32 5, %s16
      %p251 = scmp.lt.s32.totalorder %s250, 14
      %s252 = scalar_select %p251, %s250, 14
      %s253 = smul.addr %s252, 8
      %s254 = scalar_lea.vmem %s4, %s253
      %p255 = pneg %p136
      %p256 = pneg %p133
      %p257 = pneg %p162
      %p258 = pneg %p159
      %s259 = smul.u32 5, %s16
      %p260 = scmp.lt.s32.totalorder %s259, 14
      %s261 = scalar_select %p260, %s259, 14
      %s262 = smul.addr %s261, 8
      %s263 = scalar_lea.vmem %s5, %s262
      %s264 = smul.u32 5, %s16
      %p265 = scmp.lt.s32.totalorder %s264, 14
      %s266 = scalar_select %p265, %s264, 14
      %s267 = smul.addr %s266, 4
      %s268 = scalar_lea.vmem %s1, %s267
      %s269 = smul.u32 5, %s16
      %s270 = smul.u32 5, %s16
      %p271 = scmp.lt.s32.totalorder %s270, 14
      %s272 = scalar_select %p271, %s270, 14
      %s273 = smul.addr %s272, 8
      %s274 = scalar_lea.vmem %s2, %s273
      %s275 = smul.u32 5, %s16
      %s276 = smul.u32 5, %s16
      %p277 = scmp.lt.s32.totalorder %s276, 14
      %s278 = scalar_select %p277, %s276, 14
      %s279 = smul.addr %s278, 8
      %s280 = scalar_lea.vmem %s3, %s279
      %s281 = smul.u32 5, %s16
      %s282 = smul.u32 5, %s16
      %p283 = scmp.lt.s32.totalorder %s282, 14
      %s284 = scalar_select %p283, %s282, 14
      %s285 = smul.addr %s284, 8
      %s286 = scalar_lea.vmem %s4, %s285
      %s287 = smul.u32 5, %s16
      %s288 = smul.u32 5, %s16
      %p289 = scmp.lt.s32.totalorder %s288, 14
      %s290 = scalar_select %p289, %s288, 14
      %s291 = smul.addr %s290, 8
      %s292 = scalar_lea.vmem %s5, %s291
      %s293 = smul.u32 5, %s16
      %v295 = vld [vmem:[%s268] sm:$0xf]
      %v296 = vld [vmem:[%s268 + $0x4] sm:$0xf]
      %v297 = vld [vmem:[%s268 + $0x8] sm:$0xf]
      %v298 = vld [vmem:[%s268 + $0xc] sm:$0xf]
      %v299 = vld [vmem:[%s268 + $0x10] sm:$0xf]
      %v300 = vld [vmem:[%s0] sm:$0xf]
      %v301 = vld [vmem:[%s0 + $0x4] sm:$0xf]
      %v302 = vld [vmem:[%s0 + $0x8] sm:$0xf]
      %v303 = vld [vmem:[%s0 + $0xc] sm:$0xf]
      %v304 = vld [vmem:[%s0 + $0x10] sm:$0xf]
      %v305 = vld [vmem:[%s0 + $0x14] sm:$0xf]
      %v306 = vld [vmem:[%s0 + $0x18] sm:$0xf]
      %v307 = vld [vmem:[%s0 + $0x1c] sm:$0xf]
      %v308 = vld [vmem:[%s0 + $0x20] sm:$0xf]
      %v309 = vld [vmem:[%s0 + $0x24] sm:$0xf]
      %v310 = vld [vmem:[%s0 + $0x28] sm:$0xf]
      %v311 = vld [vmem:[%s0 + $0x2c] sm:$0xf]
      %v312 = vld [vmem:[%s0 + $0x30] sm:$0xf]
      %v313 = vld [vmem:[%s0 + $0x34] sm:$0xf]
      %v314 = vld [vmem:[%s0 + $0x38] sm:$0xf]
      %v315 = vld [vmem:[%s0 + $0x3c] sm:$0xf]
      %v321 = vunpack.c.l.b16 %v295
      %v322 = vunpack.c.l.b16 %v296
      %v323 = vunpack.c.l.b16 %v297
      %v324 = vunpack.c.l.b16 %v298
      %v325 = vunpack.c.l.b16 %v299
      %v326 = vpack.c.b16 %v322, %v321
      %v327 = vpack.c.b16 %v324, %v323
      %v328 = vpack.c.b16 %v325, %v325
      %v348 = vunpack.c.l.b16 %v300
      %v349 = vunpack.c.l.b16 %v301
      %v350 = vunpack.c.l.b16 %v302
      %v351 = vunpack.c.l.b16 %v303
      %v352 = vunpack.c.l.b16 %v304
      %v353 = vunpack.c.l.b16 %v305
      %v354 = vunpack.c.l.b16 %v306
      %v355 = vunpack.c.l.b16 %v307
      %v356 = vunpack.c.l.b16 %v308
      %v357 = vunpack.c.l.b16 %v309
      %v358 = vunpack.c.l.b16 %v310
      %v359 = vunpack.c.l.b16 %v311
      %v360 = vunpack.c.l.b16 %v312
      %v361 = vunpack.c.l.b16 %v313
      %v362 = vunpack.c.l.b16 %v314
      %v363 = vunpack.c.l.b16 %v315
      %v364 = vpack.c.b16 %v349, %v348
      %v365 = vpack.c.b16 %v351, %v350
      %v366 = vpack.c.b16 %v353, %v352
      %v367 = vpack.c.b16 %v355, %v354
      %v368 = vpack.c.b16 %v357, %v356
      %v369 = vpack.c.b16 %v359, %v358
      %v370 = vpack.c.b16 %v361, %v360
      %v371 = vpack.c.b16 %v363, %v362
      %380 = vmatprep.subr.bf16.mxu0 0
      %381 = vmatpush1.bf16.msra.mxu0 %v364
      %382 = vmatprep.subr.bf16.mxu0 0
      %383 = vmatpush1.bf16.msra.mxu0 %v365
      %384 = vmatprep.subr.bf16.mxu0 0
      %385 = vmatpush1.bf16.msra.mxu0 %v366
      %386 = vmatprep.subr.bf16.mxu0 0
      %387 = vmatpush1.bf16.msra.mxu0 %v367
      %388 = vmatprep.subr.bf16.mxu0 0
      %389 = vmatpush1.bf16.msra.mxu0 %v368
      %390 = vmatprep.subr.bf16.mxu0 0
      %391 = vmatpush1.bf16.msra.mxu0 %v369
      %392 = vmatprep.subr.bf16.mxu0 0
      %393 = vmatpush1.bf16.msra.mxu0 %v370
      %394 = vmatprep.subr.bf16.mxu0 0
      %395 = vmatpush1.bf16.msra.mxu0 %v371
      %396 = vmatprep.subr.bf16.mxu0 0
      %397 = vmatpush1.bf16.msra.mxu0 0
      %398 = vmatprep.subr.bf16.mxu0 0
      %399 = vmatpush1.bf16.msra.mxu0 0
      %400 = vmatprep.subr.bf16.mxu0 0
      %401 = vmatpush1.bf16.msra.mxu0 0
      %402 = vmatprep.subr.bf16.mxu0 0
      %403 = vmatpush1.bf16.msra.mxu0 0
      %404 = vmatprep.subr.bf16.mxu0 0
      %405 = vmatpush1.bf16.msra.mxu0 0
      %406 = vmatprep.subr.bf16.mxu0 0
      %407 = vmatpush1.bf16.msra.mxu0 0
      %408 = vmatprep.subr.bf16.mxu0 0
      %409 = vmatpush1.bf16.msra.mxu0 0
      %410 = vmatprep.subr.bf16.mxu0 0
      %411 = vmatpush1.bf16.msra.mxu0 0
      %412 = vmatprep.mubr.bf16.mxu0 0
      %413 = vmatmul.mubr.bf16.gmra.mrb[0].mxu0 %v326
      %v414 = vpop.f32.mrb[0].mxu0
      %v415 = vadd.f32 0.0, %v414
      %v416 = vpop.f32.mrb[0].mxu0
      %v417 = vpop.f32.mrb[0].mxu0
      %v418 = vadd.f32 0.0, %v417
      %v419 = vpop.f32.mrb[0].mxu0
      %420 = vmatprep.mubr.bf16.mxu0 0
      %421 = vmatmul.mubr.bf16.gmra.mrb[0].mxu0 %v327
      %v422 = vpop.f32.mrb[0].mxu0
      %v423 = vadd.f32 0.0, %v422
      %v424 = vpop.f32.mrb[0].mxu0
      %v425 = vpop.f32.mrb[0].mxu0
      %v426 = vadd.f32 0.0, %v425
      %v427 = vpop.f32.mrb[0].mxu0
      %428 = vmatprep.mubr.bf16.mxu0 0
      %429 = vmatmul.mubr.bf16.gmra.mrb[0].mxu0 %v328
      %v430 = vpop.f32.mrb[0].mxu0
      %v431 = vadd.f32 0.0, %v430
      %v432 = vpop.f32.mrb[0].mxu0
      %v433 = vpop.f32.mrb[0].mxu0
      %v434 = vpop.f32.mrb[0].mxu0
      %435 = vdwg.mxu0
      %vm436 = vcmask 801792
      %v437 = vsel %vm436, %v415, 0.0
      %438 = vadd.xlane.f32.xlu0 %v437
      %v439 = vpop.xlane.xlu0 %438
      %v440 = vsel %vm436, %v418, 0.0
      %441 = vadd.xlane.f32.xlu0 %v440
      %v442 = vpop.xlane.xlu0 %441
      %v443 = vsel %vm436, %v423, 0.0
      %444 = vadd.xlane.f32.xlu0 %v443
      %v445 = vpop.xlane.xlu0 %444
      %v446 = vsel %vm436, %v426, 0.0
      %447 = vadd.xlane.f32.xlu0 %v446
      %v448 = vpop.xlane.xlu0 %447
      %v449 = vsel %vm436, %v431, 0.0
      %450 = vadd.xlane.f32.xlu0 %v449
      %v451 = vpop.xlane.xlu0 %450
      %v452 = vmul.f32 %v415, %v415
      %v453 = vmul.f32 %v418, %v418
      %v454 = vmul.f32 %v423, %v423
      %v455 = vmul.f32 %v426, %v426
      %v456 = vmul.f32 %v431, %v431
      %v457 = vsel %vm436, %v452, 0.0
      %458 = vadd.xlane.f32.xlu0 %v457
      %v459 = vpop.xlane.xlu0 %458
      %v460 = vsel %vm436, %v453, 0.0
      %461 = vadd.xlane.f32.xlu0 %v460
      %v462 = vpop.xlane.xlu0 %461
      %v463 = vsel %vm436, %v454, 0.0
      %464 = vadd.xlane.f32.xlu0 %v463
      %v465 = vpop.xlane.xlu0 %464
      %v466 = vsel %vm436, %v455, 0.0
      %467 = vadd.xlane.f32.xlu0 %v466
      %v468 = vpop.xlane.xlu0 %467
      %v469 = vsel %vm436, %v456, 0.0
      %470 = vadd.xlane.f32.xlu0 %v469
      %v471 = vpop.xlane.xlu0 %470
      %v472 = vmul.f32 %v439, 0.010204081
      %v473 = vmul.f32 %v442, 0.010204081
      %v474 = vmul.f32 %v445, 0.010204081
      %v475 = vmul.f32 %v448, 0.010204081
      %v476 = vmul.f32 %v451, 0.010204081
      %v477 = vmul.f32 %v459, 0.010204081
      %v478 = vmul.f32 %v462, 0.010204081
      %v479 = vmul.f32 %v465, 0.010204081
      %v480 = vmul.f32 %v468, 0.010204081
      %v481 = vmul.f32 %v471, 0.010204081
      %v482 = vmul.f32 %v472, %v472
      %v483 = vmul.f32 %v473, %v473
      %v484 = vmul.f32 %v474, %v474
      %v485 = vmul.f32 %v475, %v475
      %v486 = vmul.f32 %v476, %v476
      %v487 = vsub.f32 %v477, %v482
      %v488 = vsub.f32 %v478, %v483
      %v489 = vsub.f32 %v479, %v484
      %v490 = vsub.f32 %v480, %v485
      %v491 = vsub.f32 %v481, %v486
      %v492 = vld [vmem:[%s280] sm:$0xff]
      %v493 = vld [vmem:[%s280 + $0x8] sm:$0xff]
      %v494 = vld [vmem:[%s280 + $0x10] sm:$0xff]
      %v495 = vld [vmem:[%s280 + $0x18] sm:$0xff]
      %v496 = vld [vmem:[%s280 + $0x20] sm:$0xff]
      %v497 = vadd.f32 %v487, 1e-05
      %v498 = vadd.f32 %v488, 1e-05
      %v499 = vadd.f32 %v489, 1e-05
      %v500 = vadd.f32 %v490, 1e-05
      %v501 = vadd.f32 %v491, 1e-05
      %v502 = vrsqrt.pop %v497
      %v503 = vrsqrt.pop %v498
      %v504 = vrsqrt.pop %v499
      %v505 = vrsqrt.pop %v500
      %v506 = vrsqrt.pop %v501
      %v507 = vmul.f32 %v492, %v502
      %v508 = vmul.f32 %v493, %v503
      %v509 = vmul.f32 %v494, %v504
      %v510 = vmul.f32 %v495, %v505
      %v511 = vmul.f32 %v496, %v506
      %v512 = vld [vmem:[%s286] sm:$0xff]
      %v513 = vld [vmem:[%s286 + $0x8] sm:$0xff]
      %v514 = vld [vmem:[%s286 + $0x10] sm:$0xff]
      %v515 = vld [vmem:[%s286 + $0x18] sm:$0xff]
      %v516 = vld [vmem:[%s286 + $0x20] sm:$0xff]
      %v517 = vmul.f32 %v472, %v507
      %v518 = vmul.f32 %v473, %v508
      %v519 = vmul.f32 %v474, %v509
      %v520 = vmul.f32 %v475, %v510
      %v521 = vmul.f32 %v476, %v511
      %v522 = vsub.f32 %v512, %v517
      %v523 = vsub.f32 %v513, %v518
      %v524 = vsub.f32 %v514, %v519
      %v525 = vsub.f32 %v515, %v520
      %v526 = vsub.f32 %v516, %v521
      %528 = vset.pattern.permute.xlu0 0
      %529 = vperm.xlu0 %528, %v507
      %v530 = vpop.permute.xlu0 %529
      %533 = vset.pattern.permute.xlu0 0
      %534 = vperm.xlu0 %533, %v508
      %v535 = vpop.permute.xlu0 %534
      %538 = vset.pattern.permute.xlu0 0
      %539 = vperm.xlu0 %538, %v509
      %v540 = vpop.permute.xlu0 %539
      %543 = vset.pattern.permute.xlu0 0
      %544 = vperm.xlu0 %543, %v510
      %v545 = vpop.permute.xlu0 %544
      %548 = vset.pattern.permute.xlu0 0
      %549 = vperm.xlu0 %548, %v511
      %v550 = vpop.permute.xlu0 %549
      %v552 = vmul.f32 %v415, %v530
      %v553 = vmul.f32 %v418, %v535
      %v554 = vmul.f32 %v423, %v540
      %v555 = vmul.f32 %v426, %v545
      %v556 = vmul.f32 %v431, %v550
      %558 = vset.pattern.permute.xlu0 0
      %559 = vperm.xlu0 %558, %v522
      %v560 = vpop.permute.xlu0 %559
      %563 = vset.pattern.permute.xlu0 0
      %564 = vperm.xlu0 %563, %v523
      %v565 = vpop.permute.xlu0 %564
      %568 = vset.pattern.permute.xlu0 0
      %569 = vperm.xlu0 %568, %v524
      %v570 = vpop.permute.xlu0 %569
      %573 = vset.pattern.permute.xlu0 0
      %574 = vperm.xlu0 %573, %v525
      %v575 = vpop.permute.xlu0 %574
      %578 = vset.pattern.permute.xlu0 0
      %579 = vperm.xlu0 %578, %v526
      %v580 = vpop.permute.xlu0 %579
      %v582 = vadd.f32 %v552, %v560
      %v583 = vadd.f32 %v553, %v565
      %v584 = vadd.f32 %v554, %v570
      %v585 = vadd.f32 %v555, %v575
      %v586 = vadd.f32 %v556, %v580
      %v587 = vld [vmem:[%s274] sm:$0xff]
      %v588 = vld [vmem:[%s274 + $0x8] sm:$0xff]
      %v589 = vld [vmem:[%s274 + $0x10] sm:$0xff]
      %v590 = vld [vmem:[%s274 + $0x18] sm:$0xff]
      %v591 = vld [vmem:[%s274 + $0x20] sm:$0xff]
      %v592 = vadd.f32 %v582, %v587
      %v593 = vadd.f32 %v583, %v588
      %v594 = vadd.f32 %v584, %v589
      %v595 = vadd.f32 %v585, %v590
      %v596 = vadd.f32 %v586, %v591
      %v597 = vmax.f32 %v592, 0.0
      %v598 = vmax.f32 %v593, 0.0
      %v599 = vmax.f32 %v594, 0.0
      %v600 = vmax.f32 %v595, 0.0
      %v601 = vmax.f32 %v596, 0.0
      %602 = vst.msk [vmem:[%s292] sm:$0xff] %vm436, %v597
      %603 = vst.msk [vmem:[%s292 + $0x8] sm:$0xff] %vm436, %v598
      %604 = vst.msk [vmem:[%s292 + $0x10] sm:$0xff] %vm436, %v599
      %605 = vst.msk [vmem:[%s292 + $0x18] sm:$0xff] %vm436, %v600
      %606 = vst.msk [vmem:[%s292 + $0x20] sm:$0xff] %vm436, %v601
      %s607 = smul.u32 5, %s16
      %p608 = scmp.lt.s32.totalorder %s607, 14
      %s609 = scalar_select %p608, %s607, 14
      %s610 = smul.addr %s609, 8
      %s611 = scalar_lea.vmem %s5, %s610
      // Predicated region
      $region41: #{tpu_custom_call.1} parent=39 // pred_check
        %p612 = pneg %p159
      $region42: #{tpu_custom_call.1} parent=39 // pred_check_branch
        %614 = sbr.rel (%p612) target = $region44
      $region43: #{tpu_custom_call.1} parent=39 // pred_region
        %s615 = smul.u32 5, %s16
      $region44: #{tpu_custom_call.1} parent=39 // pred_fallthru
        _
    $region40: #{tpu_custom_call.1} parent=5 // pred_fallthru
      _
    %p616 = scmp.le.s32.totalorder 2, %s11
    // Predicated region
    $region45: #{tpu_custom_call.1} parent=5 // pred_check
      %p617 = pneg %p616
    $region46: #{tpu_custom_call.1} parent=5 // pred_check_branch
      %619 = sbr.rel (%p617) target = $region48
    $region47: #{tpu_custom_call.1} parent=5 // pred_region
      %s620 = ssub.s32 %s11, 2
      // Predicated region
      $region49: #{tpu_custom_call.1} parent=47 // pred_check
        %p621 = pneg %p165
      $region50: #{tpu_custom_call.1} parent=47 // pred_check_branch
        %623 = sbr.rel (%p621) target = $region52
      $region51: #{tpu_custom_call.1} parent=47 // pred_region
        %s624 = smul.u32 5, %s17
        %p625 = scmp.lt.s32.totalorder %s624, 14
        %s626 = scalar_select %p625, %s624, 14
        %s627 = smul.addr %s626, 8
        %s628 = scalar_lea.vmem %s5, %s627
      $region52: #{tpu_custom_call.1} parent=47 // pred_fallthru
        _
    $region48: #{tpu_custom_call.1} parent=5 // pred_fallthru
      _
  $region6: #{tpu_custom_call.1} parent=0 // loop_footer
    %s15 = sadd.s32 1, %s11
  $region7: #{tpu_custom_call.1} parent=0 // loop_footer_branch
    %10 = sbr.rel target = $region3
  $region8: #{tpu_custom_call.1} parent=0 // loop_exit
    _

</llo_original>
